<compile_context>
chip_gen: v7x
topology: tpu7x:2x2x1
jax: 0.10.0
libtpu: 0.0.40
codegen_flags: <defaults>
</compile_context>

<pallas_src>
import functools

import jax
import jax.numpy as jnp
from jax.experimental import pallas as pl
from jax.experimental.pallas import tpu as pltpu

MAX_TILE_M = 2048  # lanes per grid step (use the whole M when it fits)


def _pick_tile_m(m):
    if m <= MAX_TILE_M:
        return m
    for t in range(MAX_TILE_M, 127, -128):
        if m % t == 0:
            return t
    # TODO(synk): ragged M (not a multiple of 128) would need a masked tail tile.
    return 128


# ----------------------------------------------------------------- kernel ---

def fused_layer_kernel(x_ref, w_ref, b_ref, gamma_ref, beta_ref, o_ref,
                       y_scr, s_scr, ss_scr, *, eps, inv_m):
    """One Conv1x1 + ReLU + BatchNorm(training) layer.

    Grid = (2, M // tile_m):
      phase 0: y = relu(W @ x + b) for lane tile j is stored to the resident
               VMEM scratch; per-channel sum / sum-of-squares accumulated.
      phase 1: scale/shift derived from the accumulated batch stats and
               applied to the resident activation; result stored lane-dense.
    """
    phase = pl.program_id(0)
    j = pl.program_id(1)
    tile_m = o_ref.shape[-1]
    start = pl.multiple_of(j * tile_m, 128)

    @pl.when(phase == 0)
    def _conv_relu_stats():
        @pl.when(j == 0)
        def _init():
            s_scr[...] = jnp.zeros_like(s_scr)
            ss_scr[...] = jnp.zeros_like(ss_scr)

        y = jnp.dot(w_ref[...], x_ref[...],
                    preferred_element_type=jnp.float32)       # (Cout, tile_m)
        y = jnp.maximum(y + b_ref[...], 0.0)                  # bias + ReLU
        y_scr[:, pl.ds(start, tile_m)] = y
        s_scr[...] += jnp.sum(y, axis=-1, keepdims=True)      # (Cout, 1)
        ss_scr[...] += jnp.sum(y * y, axis=-1, keepdims=True)

    @pl.when(phase == 1)
    def _bn_apply():
        mean = s_scr[...] * inv_m
        var = ss_scr[...] * inv_m - mean * mean                # biased var
        inv_std = jax.lax.rsqrt(var + eps)
        scale = gamma_ref[...] * inv_std                       # (Cout, 1)
        shift = beta_ref[...] - mean * scale
        y = y_scr[:, pl.ds(start, tile_m)]
        o_ref[...] = y * scale + shift


# ---------------------------------------------------------------- wrapper ---

def fused_conv_relu_bn_layer(x2d, w_t, b, gamma, beta, eps=1e-5):
    cin, m = x2d.shape
    cout = w_t.shape[0]
    assert m % 128 == 0, "batch*spatial must be a multiple of 128"
    tile_m = _pick_tile_m(m)
    n_tiles = m // tile_m
    # TODO(synk): on v7x, budget the (Cout, M) resident scratch against 64 MiB
    # VMEM (fall back to a two-pass HBM version above ~16-24 MiB); a 'parallel'
    # tile axis for megacore would also need per-core partial stat accumulators.
    kernel = functools.partial(fused_layer_kernel, eps=eps, inv_m=1.0 / m)
    return pl.pallas_call(
        kernel,
        out_shape=jax.ShapeDtypeStruct((cout, m), jnp.float32),
        grid_spec=pltpu.PrefetchScalarGridSpec(
            num_scalar_prefetch=0,
            grid=(2, n_tiles),
            in_specs=[
                # x tiles are walked in phase 0 and pinned to tile 0 in phase 1
                # (no redundant input DMA while applying BN).
                pl.BlockSpec((cin, tile_m), lambda p, j: (0, j * (1 - p))),
                pl.BlockSpec((cout, cin), lambda p, j: (0, 0)),
                pl.BlockSpec((cout, 1), lambda p, j: (0, 0)),
                pl.BlockSpec((cout, 1), lambda p, j: (0, 0)),
                pl.BlockSpec((cout, 1), lambda p, j: (0, 0)),
            ],
            # Output pinned to tile 0 during phase 0 (never written there) and
            # walked in phase 1 -> each output block is written back exactly
            # once, after it holds real data.
            out_specs=pl.BlockSpec((cout, tile_m), lambda p, j: (0, j * p)),
            scratch_shapes=[
                pltpu.VMEM((cout, m), jnp.float32),   # resident activation
                pltpu.VMEM((cout, 1), jnp.float32),   # per-channel sum
                pltpu.VMEM((cout, 1), jnp.float32),   # per-channel sum of sq.
            ],
        ),
        compiler_params=pltpu.CompilerParams(
            dimension_semantics=("arbitrary", "arbitrary")),
    )(x2d, w_t, b, gamma, beta)


def simple_conv_controller_forward(x_nchw, params, eps=1e-5):
    """Forward pass equivalent to SimpleConvController.forward (kernel_size=1,
    activation='relu', norm_layer=BatchNorm2d in training mode)."""
    n, c, h, w = x_nchw.shape
    # channels -> sublanes, batch*spatial -> lanes.  Only the two leading dims
    # move (minor dims untouched) and it happens once for the whole stack.
    x2d = jnp.transpose(x_nchw, (1, 0, 2, 3)).reshape(c, n * h * w)
    for (w_t, b, gamma, beta) in params:
        x2d = fused_conv_relu_bn_layer(x2d, w_t, b, gamma, beta, eps)
    cout = x2d.shape[0]
    return jnp.transpose(x2d.reshape(cout, n, h, w), (1, 0, 2, 3))


# -------------------------------------------------------------- reference ---

def reference_forward(x_nchw, params, eps=1e-5):
    x = x_nchw
    for (w_t, b, gamma, beta) in params:
        y = jnp.einsum('oc,nchw->nohw', w_t, x) + b[:, 0][None, :, None, None]
        y = jnp.maximum(y, 0.0)
        mean = jnp.mean(y, axis=(0, 2, 3))
        var = jnp.var(y, axis=(0, 2, 3))
        x = ((y - mean[None, :, None, None])
             * jax.lax.rsqrt(var + eps)[None, :, None, None]
             * gamma[:, 0][None, :, None, None]
             + beta[:, 0][None, :, None, None])
    return x


# ------------------------------------------------------------------- main ---

if __name__ == "__main__":
    num_layers = 2
    # NOTE: the PyTorch module builds Conv2d(in_channels, latent_channels) for
    # *every* layer, so stacking more than one layer requires
    # in_channels == latent_channels.
    N, C, H, W = 2, 8, 16, 16
    latent = 8

    key = jax.random.PRNGKey(0)
    keys = jax.random.split(key, 1 + 2 * num_layers)
    x = jax.random.normal(keys[0], (N, C, H, W), jnp.float32)

    params = []
    for i in range(num_layers):
        w_t = 0.3 * jax.random.normal(keys[1 + 2 * i], (latent, C), jnp.float32)
        b = 0.1 * jax.random.normal(keys[2 + 2 * i], (latent, 1), jnp.float32)
        gamma = jnp.ones((latent, 1), jnp.float32)   # BatchNorm2d affine init
        beta = jnp.zeros((latent, 1), jnp.float32)
        params.append((w_t, b, gamma, beta))

    out = simple_conv_controller_forward(x, params)
    out = jax.block_until_ready(out)

    ref = reference_forward(x, params)
    assert out.shape == (N, latent, H, W), out.shape
    if not jnp.allclose(out, ref, atol=1e-4, rtol=1e-4):
        raise AssertionError("Pallas output mismatch vs. JAX reference")

    print("KERNEL_OK")
</pallas_src>

<mosaic_0001>
module attributes {stable_mosaic.version = 11 : i64} {
  func.func @fused_layer_kernel(%arg0: i32, %arg1: i32, %arg2: memref<8x512xf32, #tpu.memory_space<vmem>>, %arg3: memref<8x8xf32, #tpu.memory_space<vmem>>, %arg4: memref<8x1xf32, #tpu.memory_space<vmem>>, %arg5: memref<8x1xf32, #tpu.memory_space<vmem>>, %arg6: memref<8x1xf32, #tpu.memory_space<vmem>>, %arg7: memref<8x512xf32, #tpu.memory_space<vmem>>, %arg8: memref<8x512xf32, #tpu.memory_space<vmem>>, %arg9: memref<8x1xf32, #tpu.memory_space<vmem>>, %arg10: memref<8x1xf32, #tpu.memory_space<vmem>>) attributes {dimension_semantics = [#tpu.dimension_semantics<arbitrary>, #tpu.dimension_semantics<arbitrary>], iteration_bounds = array<i64: 2, 1>, scalar_prefetch = 0 : i64, scratch_operands = 3 : i64, tpu.core_type = #tpu.core_type<tc>, window_params = [{transform_indices = @transform_0, window_bounds = array<i64: 8, 512>}, {pipeline_mode = #tpu.pipeline_mode<synchronous>, transform_indices = @transform_1, window_bounds = array<i64: 8, 8>}, {pipeline_mode = #tpu.pipeline_mode<synchronous>, transform_indices = @transform_2, window_bounds = array<i64: 8, 1>}, {pipeline_mode = #tpu.pipeline_mode<synchronous>, transform_indices = @transform_3, window_bounds = array<i64: 8, 1>}, {pipeline_mode = #tpu.pipeline_mode<synchronous>, transform_indices = @transform_4, window_bounds = array<i64: 8, 1>}, {transform_indices = @transform_5, window_bounds = array<i64: 8, 512>}]} {
    %c512_i32 = arith.constant 512 : i32
    %0 = arith.muli %arg1, %c512_i32 : i32
    %1 = tpu.assume_multiple %0, 128 : i32
    %c0_i32 = arith.constant 0 : i32
    %2 = arith.cmpi eq, %arg0, %c0_i32 : i32
    %3 = arith.extui %2 : i1 to i32
    %c0_i32_0 = arith.constant 0 : i32
    %4 = arith.cmpi ne, %3, %c0_i32_0 : i32
    scf.if %4 {
      %c0_i32_2 = arith.constant 0 : i32
      %8 = arith.cmpi eq, %arg1, %c0_i32_2 : i32
      %9 = arith.extui %8 : i1 to i32
      %c0_i32_3 = arith.constant 0 : i32
      %10 = arith.cmpi ne, %9, %c0_i32_3 : i32
      scf.if %10 {
        %cst_21 = arith.constant 0.000000e+00 : f32
        %32 = vector.broadcast %cst_21 : f32 to vector<8x1xf32>
        %c0_22 = arith.constant 0 : index
        %c0_23 = arith.constant 0 : index
        %33 = vector.load %arg9[%c0_22, %c0_23] : memref<8x1xf32, #tpu.memory_space<vmem>>, vector<8x1xf32>
        tpu.vector_store %arg9[%c0_22, %c0_23], %32 {strides = array<i32>} : memref<8x1xf32, #tpu.memory_space<vmem>>, vector<8x1xf32>,
        %cst_24 = arith.constant 0.000000e+00 : f32
        %34 = vector.broadcast %cst_24 : f32 to vector<8x1xf32>
        %c0_25 = arith.constant 0 : index
        %c0_26 = arith.constant 0 : index
        %35 = vector.load %arg10[%c0_25, %c0_26] : memref<8x1xf32, #tpu.memory_space<vmem>>, vector<8x1xf32>
        tpu.vector_store %arg10[%c0_25, %c0_26], %34 {strides = array<i32>} : memref<8x1xf32, #tpu.memory_space<vmem>>, vector<8x1xf32>,
      } else {
      }
      %c0 = arith.constant 0 : index
      %c0_4 = arith.constant 0 : index
      %11 = vector.load %arg3[%c0, %c0_4] : memref<8x8xf32, #tpu.memory_space<vmem>>, vector<8x8xf32>
      %c0_5 = arith.constant 0 : index
      %c0_6 = arith.constant 0 : index
      %12 = vector.load %arg2[%c0_5, %c0_6] : memref<8x512xf32, #tpu.memory_space<vmem>>, vector<8x512xf32>
      %cst = arith.constant dense<0.000000e+00> : vector<8x512xf32>
      %13 = tpu.matmul %11, %12, %cst {dimension_numbers = #tpu.dot_dimension_numbers<[1], [0], [0], [1], [0, 0, 1, 1], [], []>} : vector<8x8xf32>, vector<8x512xf32>, vector<8x512xf32> -> vector<8x512xf32>
      %c0_7 = arith.constant 0 : index
      %c0_8 = arith.constant 0 : index
      %14 = vector.load %arg4[%c0_7, %c0_8] : memref<8x1xf32, #tpu.memory_space<vmem>>, vector<8x1xf32>
      %15 = vector.broadcast %14 : vector<8x1xf32> to vector<8x512xf32>
      %16 = arith.addf %13, %15 : vector<8x512xf32>
      %cst_9 = arith.constant 0.000000e+00 : f32
      %17 = vector.broadcast %cst_9 : f32 to vector<8x512xf32>
      %18 = arith.maximumf %16, %17 : vector<8x512xf32>
      %c0_10 = arith.constant 0 : index
      %19 = arith.index_cast %1 : i32 to index
      %20 = vector.load %arg8[%c0_10, %19] : memref<8x512xf32, #tpu.memory_space<vmem>>, vector<8x512xf32>
      tpu.vector_store %arg8[%c0_10, %19], %18 {strides = array<i32>} : memref<8x512xf32, #tpu.memory_space<vmem>>, vector<8x512xf32>,
      %c0_11 = arith.constant 0 : index
      %c0_12 = arith.constant 0 : index
      %21 = vector.load %arg9[%c0_11, %c0_12] : memref<8x1xf32, #tpu.memory_space<vmem>>, vector<8x1xf32>
      %cst_13 = arith.constant dense<0.000000e+00> : vector<8xf32>
      %22 = vector.multi_reduction <add>, %18, %cst_13 [1] : vector<8x512xf32> to vector<8xf32>
      %23 = vector.shape_cast %22 : vector<8xf32> to vector<8x1xf32>
      %24 = arith.addf %21, %23 : vector<8x1xf32>
      %c0_14 = arith.constant 0 : index
      %c0_15 = arith.constant 0 : index
      %25 = vector.load %arg9[%c0_14, %c0_15] : memref<8x1xf32, #tpu.memory_space<vmem>>, vector<8x1xf32>
      tpu.vector_store %arg9[%c0_14, %c0_15], %24 {strides = array<i32>} : memref<8x1xf32, #tpu.memory_space<vmem>>, vector<8x1xf32>,
      %c0_16 = arith.constant 0 : index
      %c0_17 = arith.constant 0 : index
      %26 = vector.load %arg10[%c0_16, %c0_17] : memref<8x1xf32, #tpu.memory_space<vmem>>, vector<8x1xf32>
      %27 = arith.mulf %18, %18 : vector<8x512xf32>
      %cst_18 = arith.constant dense<0.000000e+00> : vector<8xf32>
      %28 = vector.multi_reduction <add>, %27, %cst_18 [1] : vector<8x512xf32> to vector<8xf32>
      %29 = vector.shape_cast %28 : vector<8xf32> to vector<8x1xf32>
      %30 = arith.addf %26, %29 : vector<8x1xf32>
      %c0_19 = arith.constant 0 : index
      %c0_20 = arith.constant 0 : index
      %31 = vector.load %arg10[%c0_19, %c0_20] : memref<8x1xf32, #tpu.memory_space<vmem>>, vector<8x1xf32>
      tpu.vector_store %arg10[%c0_19, %c0_20], %30 {strides = array<i32>} : memref<8x1xf32, #tpu.memory_space<vmem>>, vector<8x1xf32>,
    } else {
    }
    %c1_i32 = arith.constant 1 : i32
    %5 = arith.cmpi eq, %arg0, %c1_i32 : i32
    %6 = arith.extui %5 : i1 to i32
    %c0_i32_1 = arith.constant 0 : i32
    %7 = arith.cmpi ne, %6, %c0_i32_1 : i32
    scf.if %7 {
      %c0 = arith.constant 0 : index
      %c0_2 = arith.constant 0 : index
      %8 = vector.load %arg9[%c0, %c0_2] : memref<8x1xf32, #tpu.memory_space<vmem>>, vector<8x1xf32>
      %cst = arith.constant 0.001953125 : f32
      %9 = vector.broadcast %cst : f32 to vector<8x1xf32>
      %10 = arith.mulf %8, %9 : vector<8x1xf32>
      %c0_3 = arith.constant 0 : index
      %c0_4 = arith.constant 0 : index
      %11 = vector.load %arg10[%c0_3, %c0_4] : memref<8x1xf32, #tpu.memory_space<vmem>>, vector<8x1xf32>
      %cst_5 = arith.constant 0.001953125 : f32
      %12 = vector.broadcast %cst_5 : f32 to vector<8x1xf32>
      %13 = arith.mulf %11, %12 : vector<8x1xf32>
      %14 = arith.mulf %10, %10 : vector<8x1xf32>
      %15 = arith.subf %13, %14 : vector<8x1xf32>
      %cst_6 = arith.constant 9.99999974E-6 : f32
      %16 = vector.broadcast %cst_6 : f32 to vector<8x1xf32>
      %17 = arith.addf %15, %16 : vector<8x1xf32>
      %18 = math.rsqrt %17 : vector<8x1xf32>
      %c0_7 = arith.constant 0 : index
      %c0_8 = arith.constant 0 : index
      %19 = vector.load %arg5[%c0_7, %c0_8] : memref<8x1xf32, #tpu.memory_space<vmem>>, vector<8x1xf32>
      %20 = arith.mulf %19, %18 : vector<8x1xf32>
      %c0_9 = arith.constant 0 : index
      %c0_10 = arith.constant 0 : index
      %21 = vector.load %arg6[%c0_9, %c0_10] : memref<8x1xf32, #tpu.memory_space<vmem>>, vector<8x1xf32>
      %22 = arith.mulf %10, %20 : vector<8x1xf32>
      %23 = arith.subf %21, %22 : vector<8x1xf32>
      %c0_11 = arith.constant 0 : index
      %24 = arith.index_cast %1 : i32 to index
      %25 = vector.load %arg8[%c0_11, %24] : memref<8x512xf32, #tpu.memory_space<vmem>>, vector<8x512xf32>
      %26 = vector.broadcast %20 : vector<8x1xf32> to vector<8x512xf32>
      %27 = arith.mulf %25, %26 : vector<8x512xf32>
      %28 = vector.broadcast %23 : vector<8x1xf32> to vector<8x512xf32>
      %29 = arith.addf %27, %28 : vector<8x512xf32>
      %c0_12 = arith.constant 0 : index
      %c0_13 = arith.constant 0 : index
      %30 = vector.load %arg7[%c0_12, %c0_13] : memref<8x512xf32, #tpu.memory_space<vmem>>, vector<8x512xf32>
      tpu.vector_store %arg7[%c0_12, %c0_13], %29 {strides = array<i32>} : memref<8x512xf32, #tpu.memory_space<vmem>>, vector<8x512xf32>,
    } else {
    }
    return
  }
  func.func @transform_0(%arg0: i32, %arg1: i32) -> (i32, i32) {
    %c1_i32 = arith.constant 1 : i32
    %0 = arith.subi %c1_i32, %arg0 : i32
    %1 = arith.muli %arg1, %0 : i32
    %c0_i32 = arith.constant 0 : i32
    %c0_i32_0 = arith.constant 0 : i32
    return %c0_i32, %1 : i32, i32
  }
  func.func @transform_1(%arg0: i32, %arg1: i32) -> (i32, i32) {
    %c0_i32 = arith.constant 0 : i32
    %c0_i32_0 = arith.constant 0 : i32
    %c0_i32_1 = arith.constant 0 : i32
    return %c0_i32, %c0_i32_0 : i32, i32
  }
  func.func @transform_2(%arg0: i32, %arg1: i32) -> (i32, i32) {
    %c0_i32 = arith.constant 0 : i32
    %c0_i32_0 = arith.constant 0 : i32
    %c0_i32_1 = arith.constant 0 : i32
    return %c0_i32, %c0_i32_0 : i32, i32
  }
  func.func @transform_3(%arg0: i32, %arg1: i32) -> (i32, i32) {
    %c0_i32 = arith.constant 0 : i32
    %c0_i32_0 = arith.constant 0 : i32
    %c0_i32_1 = arith.constant 0 : i32
    return %c0_i32, %c0_i32_0 : i32, i32
  }
  func.func @transform_4(%arg0: i32, %arg1: i32) -> (i32, i32) {
    %c0_i32 = arith.constant 0 : i32
    %c0_i32_0 = arith.constant 0 : i32
    %c0_i32_1 = arith.constant 0 : i32
    return %c0_i32, %c0_i32_0 : i32, i32
  }
  func.func @transform_5(%arg0: i32, %arg1: i32) -> (i32, i32) {
    %0 = arith.muli %arg1, %arg0 : i32
    %c0_i32 = arith.constant 0 : i32
    %c0_i32_0 = arith.constant 0 : i32
    return %c0_i32, %0 : i32, i32
  }
}

</mosaic_0001>

<llo_original>
// kernel: tpu_custom_call.1
$region0: #{tpu_custom_call.1}
  #allocation0 [shape = 'u32[]', space=smem, size = 0x4, offset = 0x4, fixed_abs, tag = 'smem constant byte address 0x4 - core index']
  #allocation1 [shape = 'u32[144,128]{1,0:T(1,128)}', space=vmem, size = 0x12000, scoped, tag = 'internal scratch']
  #allocation2 [shape = 'f32[8,512]{1,0:T(8,128)}', space=vmem, size = 0x4000, scoped, tag = 'scratch operand']
  #allocation3 [shape = 'f32[8,1]{1,0:T(8,128)}', space=vmem, size = 0x1000, scoped, tag = 'scratch operand']
  #allocation4 [shape = 'f32[8,1]{1,0:T(8,128)}', space=vmem, size = 0x1000, scoped, tag = 'scratch operand']
  %s0 = inlined_call_operand.hbm [shape: f32[8,512], index: 0, kind: input, shape index: {}]
  %s1 = inlined_call_operand.vmem [shape: f32[8,8], index: 1, kind: input, shape index: {}]
  %s2 = inlined_call_operand.vmem [shape: f32[8,1], index: 2, kind: input, shape index: {}]
  %s3 = inlined_call_operand.vmem [shape: f32[8,1], index: 3, kind: input, shape index: {}]
  %s4 = inlined_call_operand.vmem [shape: f32[8,1], index: 4, kind: input, shape index: {}]
  %s5 = inlined_call_operand.hbm [shape: f32[8,512], index: 5, kind: output, shape index: {}]
  %s6 = sld [smem:[#allocation0]]
  $region69: #{tpu_custom_call.1} parent=0
    _
  %s8 = ssub.s32 1, %s6
  %s9 = scalar_select 0, %s8, %s6
  $region1: #{tpu_custom_call.1} parent=0
    #allocation5 [shape = 'u8[32768]{0}', space=vmem, size = 0x8000, scoped, tag = 'input window, operand 0']
    #allocation6 [shape = 's32[2]{0}', space=sflag, size = 0x8, scoped, tag = 'scoped memory for tpu_custom_call.1']
    #allocation7 [shape = 's32[2]{0}', space=sflag, size = 0x8, scoped, tag = 'scoped memory for tpu_custom_call.1']
    #allocation8 [shape = 'u8[32768]{0}', space=vmem, size = 0x8000, scoped, tag = 'output window, operand 0']
    %10 = vsyncpa [#allocation6], 0
    %s11 = scalar_lea.sflag [#allocation6], 1
    %12 = vsyncpa %s11, 0
    %13 = vsyncpa [#allocation7], 0
    %s14 = scalar_lea.sflag [#allocation7], 1
    %15 = vsyncpa %s14, 0
    loop: start=0, step=1, limit=4
    $region2: #{tpu_custom_call.1} parent=1 // loop_pre_header
      _
    $region3: #{tpu_custom_call.1} parent=1 // loop_header
      %s17 = sphi 0, %s21
      %p18 = scmp.ge.s32.totalorder %s17, 4
      %s24 = sphi 0, %s36
      %s25 = sphi 0, %s32
      %s26 = sphi 0, %s24
      %s27 = sphi 0, %s25
      %s28 = sphi 0, %s26
      %s29 = sphi 0, %s27
      %s43 = sphi 0, %s45
      %s46 = sphi 0, %s43
      %s47 = sphi 0, %s46
      %s63 = sphi 0, %s47
      %s67 = sphi 0, %s67
      %s69 = sphi 0, %s67
      %s70 = sphi 0, %s69
      %s84 = sphi 0, %s70
      %s88 = sphi 0, %s88
      %s90 = sphi 0, %s88
      %s91 = sphi 0, %s90
      %s105 = sphi 0, %s91
      %s109 = sphi 0, %s109
      %s111 = sphi 0, %s109
      %s112 = sphi 0, %s111
      %s126 = sphi 0, %s112
      %s130 = sphi 0, %s130
      %s132 = sphi 0, %s130
      %s133 = sphi 0, %s132
      %s147 = sphi 0, %s133
      %s155 = sphi 0, %s157
      %s158 = sphi 0, %s155
      %s159 = sphi 0, %s158
      %s175 = sphi 0, %s159
    $region4: #{tpu_custom_call.1} parent=1 // loop_header_branch
      %20 = sbr.rel (%p18) target = $region8
    $region5: #{tpu_custom_call.1} parent=1 // loop_body
      %s22 = ssub.s32 %s17, 1
      %s23 = ssub.s32 %s17, 2
      %s30 = sadd.s32 1, %s25
      %p31 = scmp.ge.s32.totalorder %s30, 1
      %s32 = scalar_select %p31, 0, %s30
      %s33 = sadd.s32 1, %s24
      %s34 = scalar_select %p31, %s33, %s24
      %p35 = scmp.ge.s32.totalorder %s34, 2
      %s36 = scalar_select %p35, 0, %s34
      %s37 = ssub.s32 1, %s24
      %s38 = smul.u32 %s25, %s37
      %s39 = ssub.s32 1, %s36
      %s40 = smul.u32 %s32, %s39
      %s41 = ssub.s32 %s38, %s40
      %p42 = scmp.eq.s32.totalorder %s41, 0
      %s44 = sadd.s32 %s43, 1
      %s45 = scalar_select %p42, %s43, %s44
      %p48 = pneg %p42
      %p49 = scmp.eq.s32.totalorder %s17, 1
      %p50 = por %p48, %p49
      %p51 = scmp.ne.s32.totalorder %s43, %s46
      %p52 = scmp.eq.s32.totalorder %s17, 0
      %p53 = por %p51, %p52
      %p54 = scmp.ne.s32.totalorder %s43, %s46
      %p55 = scmp.eq.s32.totalorder %s22, 1
      %p56 = por %p54, %p55
      %p57 = scmp.ne.s32.totalorder %s46, %s47
      %p58 = scmp.eq.s32.totalorder %s22, 0
      %p59 = por %p57, %p58
      %p60 = scmp.ne.s32.totalorder %s46, %s47
      %p61 = scmp.eq.s32.totalorder %s23, 1
      %p62 = por %p60, %p61
      %p64 = scmp.ne.s32.totalorder %s47, %s63
      %p65 = scmp.eq.s32.totalorder %s23, 0
      %p66 = por %p64, %p65
      %s68 = sadd.s32 %s67, 1
      %p71 = scmp.eq.s32.totalorder %s17, 1
      %p72 = scmp.ne.s32.totalorder %s67, %s69
      %p73 = scmp.eq.s32.totalorder %s17, 0
      %p74 = por %p72, %p73
      %p75 = scmp.ne.s32.totalorder %s67, %s69
      %p76 = scmp.eq.s32.totalorder %s22, 1
      %p77 = por %p75, %p76
      %p78 = scmp.ne.s32.totalorder %s69, %s70
      %p79 = scmp.eq.s32.totalorder %s22, 0
      %p80 = por %p78, %p79
      %p81 = scmp.ne.s32.totalorder %s69, %s70
      %p82 = scmp.eq.s32.totalorder %s23, 1
      %p83 = por %p81, %p82
      %p85 = scmp.ne.s32.totalorder %s70, %s84
      %p86 = scmp.eq.s32.totalorder %s23, 0
      %p87 = por %p85, %p86
      %s89 = sadd.s32 %s88, 1
      %p92 = scmp.eq.s32.totalorder %s17, 1
      %p93 = scmp.ne.s32.totalorder %s88, %s90
      %p94 = scmp.eq.s32.totalorder %s17, 0
      %p95 = por %p93, %p94
      %p96 = scmp.ne.s32.totalorder %s88, %s90
      %p97 = scmp.eq.s32.totalorder %s22, 1
      %p98 = por %p96, %p97
      %p99 = scmp.ne.s32.totalorder %s90, %s91
      %p100 = scmp.eq.s32.totalorder %s22, 0
      %p101 = por %p99, %p100
      %p102 = scmp.ne.s32.totalorder %s90, %s91
      %p103 = scmp.eq.s32.totalorder %s23, 1
      %p104 = por %p102, %p103
      %p106 = scmp.ne.s32.totalorder %s91, %s105
      %p107 = scmp.eq.s32.totalorder %s23, 0
      %p108 = por %p106, %p107
      %s110 = sadd.s32 %s109, 1
      %p113 = scmp.eq.s32.totalorder %s17, 1
      %p114 = scmp.ne.s32.totalorder %s109, %s111
      %p115 = scmp.eq.s32.totalorder %s17, 0
      %p116 = por %p114, %p115
      %p117 = scmp.ne.s32.totalorder %s109, %s111
      %p118 = scmp.eq.s32.totalorder %s22, 1
      %p119 = por %p117, %p118
      %p120 = scmp.ne.s32.totalorder %s111, %s112
      %p121 = scmp.eq.s32.totalorder %s22, 0
      %p122 = por %p120, %p121
      %p123 = scmp.ne.s32.totalorder %s111, %s112
      %p124 = scmp.eq.s32.totalorder %s23, 1
      %p125 = por %p123, %p124
      %p127 = scmp.ne.s32.totalorder %s112, %s126
      %p128 = scmp.eq.s32.totalorder %s23, 0
      %p129 = por %p127, %p128
      %s131 = sadd.s32 %s130, 1
      %p134 = scmp.eq.s32.totalorder %s17, 1
      %p135 = scmp.ne.s32.totalorder %s130, %s132
      %p136 = scmp.eq.s32.totalorder %s17, 0
      %p137 = por %p135, %p136
      %p138 = scmp.ne.s32.totalorder %s130, %s132
      %p139 = scmp.eq.s32.totalorder %s22, 1
      %p140 = por %p138, %p139
      %p141 = scmp.ne.s32.totalorder %s132, %s133
      %p142 = scmp.eq.s32.totalorder %s22, 0
      %p143 = por %p141, %p142
      %p144 = scmp.ne.s32.totalorder %s132, %s133
      %p145 = scmp.eq.s32.totalorder %s23, 1
      %p146 = por %p144, %p145
      %p148 = scmp.ne.s32.totalorder %s133, %s147
      %p149 = scmp.eq.s32.totalorder %s23, 0
      %p150 = por %p148, %p149
      %s151 = smul.u32 %s25, %s24
      %s152 = smul.u32 %s32, %s36
      %s153 = ssub.s32 %s151, %s152
      %p154 = scmp.eq.s32.totalorder %s153, 0
      %s156 = sadd.s32 %s155, 1
      %s157 = scalar_select %p154, %s155, %s156
      %p160 = pneg %p154
      %p161 = scmp.eq.s32.totalorder %s17, 1
      %p162 = por %p160, %p161
      %p163 = scmp.ne.s32.totalorder %s155, %s158
      %p164 = scmp.eq.s32.totalorder %s17, 0
      %p165 = por %p163, %p164
      %p166 = scmp.ne.s32.totalorder %s155, %s158
      %p167 = scmp.eq.s32.totalorder %s22, 1
      %p168 = por %p166, %p167
      %p169 = scmp.ne.s32.totalorder %s158, %s159
      %p170 = scmp.eq.s32.totalorder %s22, 0
      %p171 = por %p169, %p170
      %p172 = scmp.ne.s32.totalorder %s158, %s159
      %p173 = scmp.eq.s32.totalorder %s23, 1
      %p174 = por %p172, %p173
      %p176 = scmp.ne.s32.totalorder %s159, %s175
      %p177 = scmp.eq.s32.totalorder %s23, 0
      %p178 = por %p176, %p177
      %p179 = scmp.le.s32.totalorder 1, %s17
      %p180 = scmp.lt.s32.totalorder %s17, 3
      %p181 = pnand %p179, %p180
      %p182 = pneg %p181
      // Predicated region
      $region9: #{tpu_custom_call.1} parent=5 // pred_check
        _
      $region10: #{tpu_custom_call.1} parent=5 // pred_check_branch
        %184 = sbr.rel (%p181) target = $region12
      $region11: #{tpu_custom_call.1} parent=5 // pred_region
        %s185 = ssub.s32 %s17, 1
        // Predicated region
        $region13: #{tpu_custom_call.1} parent=11 // pred_check
          %p186 = pneg %p80
        $region14: #{tpu_custom_call.1} parent=11 // pred_check_branch
          %188 = sbr.rel (%p186) target = $region16
        $region15: #{tpu_custom_call.1} parent=11 // pred_region
          _
        $region16: #{tpu_custom_call.1} parent=11 // pred_fallthru
          _
        // Predicated region
        $region17: #{tpu_custom_call.1} parent=11 // pred_check
          %p189 = pneg %p101
        $region18: #{tpu_custom_call.1} parent=11 // pred_check_branch
          %191 = sbr.rel (%p189) target = $region20
        $region19: #{tpu_custom_call.1} parent=11 // pred_region
          _
        $region20: #{tpu_custom_call.1} parent=11 // pred_fallthru
          _
        // Predicated region
        $region21: #{tpu_custom_call.1} parent=11 // pred_check
          %p192 = pneg %p122
        $region22: #{tpu_custom_call.1} parent=11 // pred_check_branch
          %194 = sbr.rel (%p192) target = $region24
        $region23: #{tpu_custom_call.1} parent=11 // pred_region
          _
        $region24: #{tpu_custom_call.1} parent=11 // pred_fallthru
          _
        // Predicated region
        $region25: #{tpu_custom_call.1} parent=11 // pred_check
          %p195 = pneg %p143
        $region26: #{tpu_custom_call.1} parent=11 // pred_check_branch
          %197 = sbr.rel (%p195) target = $region28
        $region27: #{tpu_custom_call.1} parent=11 // pred_region
          _
        $region28: #{tpu_custom_call.1} parent=11 // pred_fallthru
          _
      $region12: #{tpu_custom_call.1} parent=5 // pred_fallthru
        _
      %p198 = scmp.lt.s32.totalorder %s17, 2
      // Predicated region
      $region29: #{tpu_custom_call.1} parent=5 // pred_check
        %p199 = pneg %p198
      $region30: #{tpu_custom_call.1} parent=5 // pred_check_branch
        %201 = sbr.rel (%p199) target = $region32
      $region31: #{tpu_custom_call.1} parent=5 // pred_region
        // Predicated region
        $region33: #{tpu_custom_call.1} parent=31 // pred_check
          %p202 = pneg %p53
        $region34: #{tpu_custom_call.1} parent=31 // pred_check_branch
          %204 = sbr.rel (%p202) target = $region36
        $region35: #{tpu_custom_call.1} parent=31 // pred_region
          %s205 = sand.u32 %s43, 1
          %s206 = scalar_lea.sflag [#allocation6], %s205
          %s207 = sand.u32 %s43, 1
          %s208 = smul.addr %s207, 32
          %s209 = scalar_lea.vmem [#allocation5], %s208
          %s210 = ssub.s32 1, %s24
          %s211 = smul.u32 %s25, %s210
          %s212 = smul.u32 4, %s211
          %s214 = ssub.s32 512, 512
          %215 = vsyncadd %s206, %s214
          %s216 = smul.addr %s212, 128
          %s217 = scalar_lea.hbm %s0, %s216
          %s219 = sshll.u32 %s209, 4
          %s220 = int_to_ptr.vmem [resolvable:$true] %s219
          %222 = dma.hbm_to_vmem [thread:$0]  %s217, 512, %s220, %s206
        $region36: #{tpu_custom_call.1} parent=31 // pred_fallthru
          _
      $region32: #{tpu_custom_call.1} parent=5 // pred_fallthru
        _
      %p223 = scmp.le.s32.totalorder 1, %s17
      %p224 = scmp.lt.s32.totalorder %s17, 3
      %p225 = pnand %p223, %p224
      %p226 = pneg %p225
      // Predicated region
      $region37: #{tpu_custom_call.1} parent=5 // pred_check
        _
      $region38: #{tpu_custom_call.1} parent=5 // pred_check_branch
        %228 = sbr.rel (%p225) target = $region40
      $region39: #{tpu_custom_call.1} parent=5 // pred_region
        %s229 = ssub.s32 %s17, 1
        %s230 = sand.u32 %s46, 1
        %s231 = scalar_lea.sflag [#allocation6], %s230
        %s232 = sand.u32 %s46, 1
        %s233 = smul.addr %s232, 32
        %s234 = scalar_lea.vmem [#allocation5], %s233
        // Predicated region
        $region41: #{tpu_custom_call.1} parent=39 // pred_check
          %p235 = pneg %p59
        $region42: #{tpu_custom_call.1} parent=39 // pred_check_branch
          %237 = sbr.rel (%p235) target = $region44
        $region43: #{tpu_custom_call.1} parent=39 // pred_region
          %238 = dma.done %s231, 512
        $region44: #{tpu_custom_call.1} parent=39 // pred_fallthru
          _
        %s239 = sand.u32 %s46, 1
        %s240 = scalar_lea.sflag [#allocation6], %s239
        %s241 = sand.u32 %s46, 1
        %s242 = smul.addr %s241, 32
        %s243 = scalar_lea.vmem [#allocation5], %s242
        %p244 = pneg %p59
        %p245 = pneg %p56
        %p246 = pneg %p80
        %p247 = pneg %p77
        %p248 = pneg %p101
        %p249 = pneg %p98
        %p250 = pneg %p122
        %p251 = pneg %p119
        %p252 = pneg %p143
        %p253 = pneg %p140
        %p254 = pneg %p171
        %p255 = pneg %p168
        %s256 = sand.u32 %s158, 1
        %s257 = scalar_lea.sflag [#allocation7], %s256
        %s258 = sand.u32 %s158, 1
        %s259 = smul.addr %s258, 32
        %s260 = scalar_lea.vmem [#allocation8], %s259
        %s261 = ssub.s32 1, %s26
        %s262 = smul.u32 %s27, %s261
        %s263 = smul.u32 4, %s262
        %s264 = smul.u32 %s27, %s26
        %s265 = smul.u32 4, %s264
        %s266 = smul.u32 %s27, 512
        %p267 = scmp.eq.s32.totalorder %s26, 0
        // Predicated region
        $region45: #{tpu_custom_call.1} parent=39 // pred_check
          %p268 = pneg %p267
        $region46: #{tpu_custom_call.1} parent=39 // pred_check_branch
          %270 = sbr.rel (%p268) target = $region48
        $region47: #{tpu_custom_call.1} parent=39 // pred_region
          %p271 = scmp.eq.s32.totalorder %s27, 0
          // Predicated region
          $region49: #{tpu_custom_call.1} parent=47 // pred_check
            %p272 = pneg %p271
          $region50: #{tpu_custom_call.1} parent=47 // pred_check_branch
            %274 = sbr.rel (%p272) target = $region52
          $region51: #{tpu_custom_call.1} parent=47 // pred_region
            %vm275 = vcmask 7168
            %276 = vst.msk [vmem:[#allocation3] sm:$0xff] %vm275, 0.0
            %277 = vst.msk [vmem:[#allocation4] sm:$0xff] %vm275, 0.0
          $region52: #{tpu_custom_call.1} parent=47 // pred_fallthru
            _
          %v278 = vld [vmem:[%s1] sm:$0xff]
          %v279 = vld [vmem:[%s234] sm:$0xff]
          %v280 = vld [vmem:[%s234 + $0x8] sm:$0xff]
          %v281 = vld [vmem:[%s234 + $0x10] sm:$0xff]
          %v282 = vld [vmem:[%s234 + $0x18] sm:$0xff]
          %v283 = vld [vmem:[%s2] sm:$0xff]
          %285 = vset.pattern.permute.xlu0 0
          %286 = vperm.xlu0 %285, %v283
          %v287 = vpop.permute.xlu0 %286
          %vm289 = vcmask 64512
          %v291 = vsel %vm289, %v278, 0
          %293 = vmatprep.subr.mxu0 %v280
          %294 = vmatpush1.msra.mxu0 %v279
          %295 = vmatprep.subr.mxu0 0.0
          %296 = vmatpush1.msra.mxu0 0.0
          %297 = vmatprep.subr.mxu0 0.0
          %298 = vmatpush1.msra.mxu0 0.0
          %299 = vmatprep.subr.mxu0 0.0
          %300 = vmatpush1.msra.mxu0 0.0
          %301 = vmatprep.subr.mxu0 0.0
          %302 = vmatpush1.msra.mxu0 0.0
          %303 = vmatprep.subr.mxu0 0.0
          %304 = vmatpush1.msra.mxu0 0.0
          %305 = vmatprep.subr.mxu0 0.0
          %306 = vmatpush1.msra.mxu0 0.0
          %307 = vmatprep.subr.mxu0 0.0
          %308 = vmatpush1.msra.mxu0 0.0
          %309 = vmatprep.subr.mxu0 0.0
          %310 = vmatpush1.msra.mxu0 0.0
          %311 = vmatprep.subr.mxu0 0.0
          %312 = vmatpush1.msra.mxu0 0.0
          %313 = vmatprep.subr.mxu0 0.0
          %314 = vmatpush1.msra.mxu0 0.0
          %315 = vmatprep.subr.mxu0 0.0
          %316 = vmatpush1.msra.mxu0 0.0
          %317 = vmatprep.subr.mxu0 0.0
          %318 = vmatpush1.msra.mxu0 0.0
          %319 = vmatprep.subr.mxu0 0.0
          %320 = vmatpush1.msra.mxu0 0.0
          %321 = vmatprep.subr.mxu0 0.0
          %322 = vmatpush1.msra.mxu0 0.0
          %323 = vmatprep.subr.mxu0 0.0
          %324 = vmatpush1.msra.mxu0 0.0
          %325 = vmatprep.subr.mxu0 0.0
          %326 = vmatpush1.msra.mxu0 0.0
          %327 = vmatprep.subr.mxu0 0.0
          %328 = vmatpush1.msra.mxu0 0.0
          %329 = vmatprep.subr.mxu0 0.0
          %330 = vmatpush1.msra.mxu0 0.0
          %331 = vmatprep.subr.mxu0 0.0
          %332 = vmatpush1.msra.mxu0 0.0
          %333 = vmatprep.subr.mxu0 0.0
          %334 = vmatpush1.msra.mxu0 0.0
          %335 = vmatprep.subr.mxu0 0.0
          %336 = vmatpush1.msra.mxu0 0.0
          %337 = vmatprep.subr.mxu0 0.0
          %338 = vmatpush1.msra.mxu0 0.0
          %339 = vmatprep.subr.mxu0 0.0
          %340 = vmatpush1.msra.mxu0 0.0
          %341 = vmatprep.subr.mxu0 0.0
          %342 = vmatpush1.msra.mxu0 0.0
          %343 = vmatprep.subr.mxu0 0.0
          %344 = vmatpush1.msra.mxu0 0.0
          %345 = vmatprep.subr.mxu0 0.0
          %346 = vmatpush1.msra.mxu0 0.0
          %347 = vmatprep.subr.mxu0 0.0
          %348 = vmatpush1.msra.mxu0 0.0
          %349 = vmatprep.subr.mxu0 0.0
          %350 = vmatpush1.msra.mxu0 0.0
          %351 = vmatprep.subr.mxu0 0.0
          %352 = vmatpush1.msra.mxu0 0.0
          %353 = vmatprep.subr.mxu0 0.0
          %354 = vmatpush1.msra.mxu0 0.0
          %355 = vmatprep.subr.mxu0 0.0
          %356 = vmatpush1.msra.mxu0 0.0
          %357 = vmatprep.mubr.f32.mxu0 0.0
          %358 = vmatmul.mubr.f32.gmra.mrb[0].mxu0 %v291
          %v359 = vpop.f32.mrb[0].mxu0
          %v360 = vadd.f32 %v287, %v359
          %v361 = vpop.f32.mrb[0].mxu0
          %v362 = vadd.f32 %v287, %v361
          %363 = vdwg.mxu0
          %364 = vmatprep.subr.mxu0 %v282
          %365 = vmatpush1.msra.mxu0 %v281
          %366 = vmatprep.subr.mxu0 0.0
          %367 = vmatpush1.msra.mxu0 0.0
          %368 = vmatprep.subr.mxu0 0.0
          %369 = vmatpush1.msra.mxu0 0.0
          %370 = vmatprep.subr.mxu0 0.0
          %371 = vmatpush1.msra.mxu0 0.0
          %372 = vmatprep.subr.mxu0 0.0
          %373 = vmatpush1.msra.mxu0 0.0
          %374 = vmatprep.subr.mxu0 0.0
          %375 = vmatpush1.msra.mxu0 0.0
          %376 = vmatprep.subr.mxu0 0.0
          %377 = vmatpush1.msra.mxu0 0.0
          %378 = vmatprep.subr.mxu0 0.0
          %379 = vmatpush1.msra.mxu0 0.0
          %380 = vmatprep.subr.mxu0 0.0
          %381 = vmatpush1.msra.mxu0 0.0
          %382 = vmatprep.subr.mxu0 0.0
          %383 = vmatpush1.msra.mxu0 0.0
          %384 = vmatprep.subr.mxu0 0.0
          %385 = vmatpush1.msra.mxu0 0.0
          %386 = vmatprep.subr.mxu0 0.0
          %387 = vmatpush1.msra.mxu0 0.0
          %388 = vmatprep.subr.mxu0 0.0
          %389 = vmatpush1.msra.mxu0 0.0
          %390 = vmatprep.subr.mxu0 0.0
          %391 = vmatpush1.msra.mxu0 0.0
          %392 = vmatprep.subr.mxu0 0.0
          %393 = vmatpush1.msra.mxu0 0.0
          %394 = vmatprep.subr.mxu0 0.0
          %395 = vmatpush1.msra.mxu0 0.0
          %396 = vmatprep.subr.mxu0 0.0
          %397 = vmatpush1.msra.mxu0 0.0
          %398 = vmatprep.subr.mxu0 0.0
          %399 = vmatpush1.msra.mxu0 0.0
          %400 = vmatprep.subr.mxu0 0.0
          %401 = vmatpush1.msra.mxu0 0.0
          %402 = vmatprep.subr.mxu0 0.0
          %403 = vmatpush1.msra.mxu0 0.0
          %404 = vmatprep.subr.mxu0 0.0
          %405 = vmatpush1.msra.mxu0 0.0
          %406 = vmatprep.subr.mxu0 0.0
          %407 = vmatpush1.msra.mxu0 0.0
          %408 = vmatprep.subr.mxu0 0.0
          %409 = vmatpush1.msra.mxu0 0.0
          %410 = vmatprep.subr.mxu0 0.0
          %411 = vmatpush1.msra.mxu0 0.0
          %412 = vmatprep.subr.mxu0 0.0
          %413 = vmatpush1.msra.mxu0 0.0
          %414 = vmatprep.subr.mxu0 0.0
          %415 = vmatpush1.msra.mxu0 0.0
          %416 = vmatprep.subr.mxu0 0.0
          %417 = vmatpush1.msra.mxu0 0.0
          %418 = vmatprep.subr.mxu0 0.0
          %419 = vmatpush1.msra.mxu0 0.0
          %420 = vmatprep.subr.mxu0 0.0
          %421 = vmatpush1.msra.mxu0 0.0
          %422 = vmatprep.subr.mxu0 0.0
          %423 = vmatpush1.msra.mxu0 0.0
          %424 = vmatprep.subr.mxu0 0.0
          %425 = vmatpush1.msra.mxu0 0.0
          %426 = vmatprep.subr.mxu0 0.0
          %427 = vmatpush1.msra.mxu0 0.0
          %428 = vmatprep.mubr.f32.mxu0 0.0
          %429 = vmatmul.mubr.f32.gmra.mrb[0].mxu0 %v291
          %v430 = vpop.f32.mrb[0].mxu0
          %v431 = vadd.f32 %v287, %v430
          %v432 = vpop.f32.mrb[0].mxu0
          %v433 = vadd.f32 %v287, %v432
          %434 = vdwg.mxu0
          %v435 = vmax.f32 %v360, 0.0
          %v436 = vmax.f32 %v362, 0.0
          %v437 = vmax.f32 %v431, 0.0
          %v438 = vmax.f32 %v433, 0.0
          %s439 = sshra.s32 %s266, 7
          %s440 = sand.u32 %s266, 127
          %s441 = smul.addr %s439, 8
          %s442 = scalar_lea.vmem [#allocation2], %s441
          %443 = vst [vmem:[%s442] sm:$0xff] %v435
          %444 = vst [vmem:[%s442 + $0x8] sm:$0xff] %v436
          %445 = vst [vmem:[%s442 + $0x10] sm:$0xff] %v437
          %446 = vst [vmem:[%s442 + $0x18] sm:$0xff] %v438
          %v447 = vld [vmem:[#allocation3] sm:$0xff]
          %v448 = vadd.f32 %v435, %v436
          %v449 = vadd.f32 %v448, %v437
          %v450 = vadd.f32 %v449, %v438
          %451 = vadd.xlane.f32.xlu0 %v450
          %v452 = vpop.xlane.xlu0 %451
          %v453 = vadd.f32 %v447, %v452
          %vm454 = vcmask 7168
          %455 = vst.msk [vmem:[#allocation3] sm:$0xff] %vm454, %v453
          %v456 = vld [vmem:[#allocation4] sm:$0xff]
          %v457 = vmul.f32 %v435, %v435
          %v458 = vmul.f32 %v436, %v436
          %v459 = vmul.f32 %v437, %v437
          %v460 = vmul.f32 %v438, %v438
          %v461 = vadd.f32 %v457, %v458
          %v462 = vadd.f32 %v461, %v459
          %v463 = vadd.f32 %v462, %v460
          %464 = vadd.xlane.f32.xlu0 %v463
          %v465 = vpop.xlane.xlu0 %464
          %v466 = vadd.f32 %v456, %v465
          %467 = vst.msk [vmem:[#allocation4] sm:$0xff] %vm454, %v466
        $region48: #{tpu_custom_call.1} parent=39 // pred_fallthru
          _
        %p468 = scmp.eq.s32.totalorder %s26, 1
        // Predicated region
        $region53: #{tpu_custom_call.1} parent=39 // pred_check
          %p469 = pneg %p468
        $region54: #{tpu_custom_call.1} parent=39 // pred_check_branch
          %471 = sbr.rel (%p469) target = $region56
        $region55: #{tpu_custom_call.1} parent=39 // pred_region
          %v472 = vld [vmem:[#allocation3] sm:$0xff]
          %v473 = vmul.f32 %v472, 0.001953125
          %v474 = vld [vmem:[#allocation4] sm:$0xff]
          %v475 = vmul.f32 %v474, 0.001953125
          %v476 = vmul.f32 %v473, %v473
          %v477 = vsub.f32 %v475, %v476
          %v478 = vadd.f32 %v477, 1e-05
          %v479 = vrsqrt.pop %v478
          %v480 = vld [vmem:[%s3] sm:$0xff]
          %v481 = vmul.f32 %v480, %v479
          %v482 = vld [vmem:[%s4] sm:$0xff]
          %v483 = vmul.f32 %v473, %v481
          %v484 = vsub.f32 %v482, %v483
          %s485 = sshra.s32 %s266, 7
          %s486 = sand.u32 %s266, 127
          %s487 = smul.addr %s485, 8
          %s488 = scalar_lea.vmem [#allocation2], %s487
          %v489 = vld [vmem:[%s488] sm:$0xff]
          %v490 = vld [vmem:[%s488 + $0x8] sm:$0xff]
          %v491 = vld [vmem:[%s488 + $0x10] sm:$0xff]
          %v492 = vld [vmem:[%s488 + $0x18] sm:$0xff]
          %494 = vset.pattern.permute.xlu0 0
          %495 = vperm.xlu0 %494, %v481
          %v496 = vpop.permute.xlu0 %495
          %v498 = vmul.f32 %v489, %v496
          %v499 = vmul.f32 %v490, %v496
          %v500 = vmul.f32 %v491, %v496
          %v501 = vmul.f32 %v492, %v496
          %503 = vset.pattern.permute.xlu0 0
          %504 = vperm.xlu0 %503, %v484
          %v505 = vpop.permute.xlu0 %504
          %v507 = vadd.f32 %v498, %v505
          %v508 = vadd.f32 %v499, %v505
          %v509 = vadd.f32 %v500, %v505
          %v510 = vadd.f32 %v501, %v505
          %511 = vst [vmem:[%s260] sm:$0xff] %v507
          %512 = vst [vmem:[%s260 + $0x8] sm:$0xff] %v508
          %513 = vst [vmem:[%s260 + $0x10] sm:$0xff] %v509
          %514 = vst [vmem:[%s260 + $0x18] sm:$0xff] %v510
        $region56: #{tpu_custom_call.1} parent=39 // pred_fallthru
          _
        %s515 = sand.u32 %s158, 1
        %s516 = scalar_lea.sflag [#allocation7], %s515
        %s517 = sand.u32 %s158, 1
        %s518 = smul.addr %s517, 32
        %s519 = scalar_lea.vmem [#allocation8], %s518
        // Predicated region
        $region57: #{tpu_custom_call.1} parent=39 // pred_check
          %p520 = pneg %p168
        $region58: #{tpu_custom_call.1} parent=39 // pred_check_branch
          %522 = sbr.rel (%p520) target = $region60
        $region59: #{tpu_custom_call.1} parent=39 // pred_region
          %s523 = smul.u32 %s27, %s26
          %s524 = smul.u32 4, %s523
          %s526 = ssub.s32 512, 512
          %527 = vsyncadd %s516, %s526
          %s528 = smul.addr %s524, 128
          %s529 = scalar_lea.hbm %s5, %s528
          %s531 = sshll.u32 %s519, 4
          %s532 = int_to_ptr.vmem [resolvable:$true] %s531
          %534 = dma.vmem_to_hbm [thread:$0]  %s532, 512, %s529, %s516
        $region60: #{tpu_custom_call.1} parent=39 // pred_fallthru
          _
      $region40: #{tpu_custom_call.1} parent=5 // pred_fallthru
        _
      %p535 = scmp.le.s32.totalorder 2, %s17
      // Predicated region
      $region61: #{tpu_custom_call.1} parent=5 // pred_check
        %p536 = pneg %p535
      $region62: #{tpu_custom_call.1} parent=5 // pred_check_branch
        %538 = sbr.rel (%p536) target = $region64
      $region63: #{tpu_custom_call.1} parent=5 // pred_region
        %s539 = ssub.s32 %s17, 2
        // Predicated region
        $region65: #{tpu_custom_call.1} parent=63 // pred_check
          %p540 = pneg %p174
        $region66: #{tpu_custom_call.1} parent=63 // pred_check_branch
          %542 = sbr.rel (%p540) target = $region68
        $region67: #{tpu_custom_call.1} parent=63 // pred_region
          %s543 = sand.u32 %s159, 1
          %s544 = scalar_lea.sflag [#allocation7], %s543
          %s545 = sand.u32 %s159, 1
          %s546 = smul.addr %s545, 32
          %s547 = scalar_lea.vmem [#allocation8], %s546
          %548 = dma.done %s544, 512
        $region68: #{tpu_custom_call.1} parent=63 // pred_fallthru
          _
      $region64: #{tpu_custom_call.1} parent=5 // pred_fallthru
        _
    $region6: #{tpu_custom_call.1} parent=1 // loop_footer
      %s21 = sadd.s32 1, %s17
    $region7: #{tpu_custom_call.1} parent=1 // loop_footer_branch
      %16 = sbr.rel target = $region3
    $region8: #{tpu_custom_call.1} parent=1 // loop_exit
      _
    %549 = vsyncpa [#allocation6], 1
    %s550 = scalar_lea.sflag [#allocation6], 1
    %551 = vsyncpa %s550, 1
    %552 = vsyncpa [#allocation7], 1
    %s553 = scalar_lea.sflag [#allocation7], 1
    %554 = vsyncpa %s553, 1

</llo_original>
